<compile_context>
chip_gen: v6e
topology: v6e:2x2x1
jax: 0.10.0
libtpu: 0.0.40
codegen_flags: <defaults>
</compile_context>

<pallas_src>
import functools

import jax
import jax.numpy as jnp
from jax import lax
from jax.experimental import pallas as pl
from jax.experimental.pallas import tpu as pltpu

# Conservative budgets that work across v5e / v6e / v7x.
_VMEM_BLOCK_BUDGET = 8 * 1024 * 1024    # target bytes for pipelined blocks
_VMEM_LIMIT_BYTES = 32 * 1024 * 1024    # scoped VMEM limit requested
_FUSE_PAYLOAD_BYTES = 4 * 1024 * 1024   # stack-and-fuse items smaller than this


def _round_up(x, m):
    return ((x + m - 1) // m) * m


def _pick_tile_n(n_rows, d):
    """Pick a row tile that keeps double-buffered, lane-padded blocks in budget."""
    d_pad = _round_up(max(d, 1), 128)
    # x + y double-buffered, mask block (lane-padded to 128), resident out acc.
    bytes_per_row = 4 * (2 * 2 * d_pad + 2 * 128 + 2 * d_pad)
    budget_rows = max(16, (_VMEM_BLOCK_BUDGET // bytes_per_row) // 16 * 16)
    if n_rows <= budget_rows:
        return n_rows            # single block equal to the full row extent
    return budget_rows           # multiple of 16 (bf16-safe sublane alignment)


def _masked_sqdiff_kernel(x_ref, y_ref, m_ref, acc_ref, *, n_rows, tile_n):
    """Accumulate masked (x - y)^2 element-wise into a per-item VMEM block."""
    t = pl.program_id(1)

    @pl.when(t == 0)
    def _zero():
        acc_ref[...] = jnp.zeros_like(acc_ref)

    # Ragged-tail handling: the last row tile may extend past n_rows and read
    # uninitialized padding.  Select BEFORE the squared term so garbage
    # (possibly NaN/Inf) can never leak via 0 * NaN.
    row_ids = t * tile_n + lax.broadcasted_iota(
        jnp.int32, (tile_n, 1), dimension=0)
    m = jnp.where(row_ids < n_rows, m_ref[0], 0.0)        # (tile_n, 1) f32
    keep = m > 0.5

    xf = x_ref[0].astype(jnp.float32)                     # (tile_n, d)
    yf = y_ref[0].astype(jnp.float32)
    diff = jnp.where(keep, xf - yf, 0.0)
    acc_ref[0] = acc_ref[0] + diff * diff


def _masked_sq_partials(x, y, m_f32, tile_n):
    """x, y: (I, N, D); m_f32: (I, N, 1).  Returns (I, tile_n, D) partial sums."""
    num_items, n_rows, d = x.shape
    num_tiles = pl.cdiv(n_rows, tile_n)
    kernel = functools.partial(
        _masked_sqdiff_kernel, n_rows=n_rows, tile_n=tile_n)

    return pl.pallas_call(
        kernel,
        out_shape=jax.ShapeDtypeStruct((num_items, tile_n, d), jnp.float32),
        grid_spec=pltpu.PrefetchScalarGridSpec(
            num_scalar_prefetch=0,
            grid=(num_items, num_tiles),
            in_specs=[
                pl.BlockSpec((1, tile_n, d), lambda i, t: (i, t, 0)),
                pl.BlockSpec((1, tile_n, d), lambda i, t: (i, t, 0)),
                pl.BlockSpec((1, tile_n, 1), lambda i, t: (i, t, 0)),
            ],
            out_specs=pl.BlockSpec((1, tile_n, d), lambda i, t: (i, 0, 0)),
        ),
        compiler_params=pltpu.CompilerParams(
            dimension_semantics=("parallel", "arbitrary"),
            vmem_limit_bytes=_VMEM_LIMIT_BYTES),
    )(x, y, m_f32)


@jax.jit
def _group_loss(x, y, m_f32):
    """Sum over items of masked-MSE for a stacked group (I, N, D)."""
    _, n_rows, d = x.shape
    tile_n = _pick_tile_n(n_rows, d)
    partial = _masked_sq_partials(x, y, m_f32, tile_n)    # (I, tile_n, D)
    sums = jnp.sum(partial, axis=(1, 2))                  # (I,)
    counts = jnp.sum(m_f32, axis=(1, 2))                  # (I,) masked rows
    denom = jnp.maximum(counts * d, 1.0)
    # nn.MSELoss = mean over all elements of the masked selection; items with
    # an all-False mask are skipped in the PyTorch module (contribute 0).
    losses = jnp.where(counts > 0, sums / denom, 0.0)
    return jnp.sum(losses)


def l2_loss(inputs, targets, masks):
    """Pallas equivalent of L2Loss(per_sequence_loss=False).forward."""
    # TODO(synk): per_sequence_loss=True branch (per-batch-index grouping via
    # boolean indexing) not implemented; default constructor path only.
    items = []
    for inp, tar, m in zip(inputs, targets, masks):
        if inp is None or inp.shape[0] == 0:
            continue
        items.append((inp, tar, m))

    total = jnp.float32(0.0)
    if not items:
        return total

    # Group same-shaped/dtyped items so they can share one fused kernel call.
    groups = {}
    for it in items:
        key = (tuple(it[0].shape), jnp.dtype(it[0].dtype).name)
        groups.setdefault(key, []).append(it)

    for (shape, _), grp in groups.items():
        n, d = shape
        payload = n * d * grp[0][0].dtype.itemsize
        if len(grp) > 1 and payload <= _FUSE_PAYLOAD_BYTES:
            # Small items: fuse into one call (stack copy << launch overhead).
            x = jnp.stack([g[0] for g in grp])
            y = jnp.stack([g[1] for g in grp])
            m = jnp.stack([g[2].astype(jnp.float32)[:, None] for g in grp])
            total = total + _group_loss(x, y, m)
        else:
            # Large items: avoid the extra HBM copy a stack/concat would cost.
            for g in grp:
                x = g[0][None]
                y = g[1][None]
                m = g[2].astype(jnp.float32)[None, :, None]
                total = total + _group_loss(x, y, m)
    return total


if __name__ == "__main__":
    key = jax.random.PRNGKey(0)
    batch, length, d = 2, 8, 32
    n = batch * length
    num_items = 3  # list of tensors (module supports up to nb_ids=10)

    inputs, targets, masks = [], [], []
    for _ in range(num_items):
        key, k1, k2, k3 = jax.random.split(key, 4)
        inputs.append(jax.random.normal(k1, (n, d), jnp.float32))
        targets.append(jax.random.normal(k2, (n, d), jnp.float32))
        masks.append(jax.random.bernoulli(k3, 0.7, (n,)))

    out = l2_loss(inputs, targets, masks)
    out = jax.block_until_ready(out)

    # Pure-JAX reference (boolean indexing outside jit) for correctness.
    ref = jnp.float32(0.0)
    for inp, tar, m in zip(inputs, targets, masks):
        if bool(m.any()):
            diff = (inp - tar)[m]
            ref = ref + jnp.mean(diff * diff)
    assert jnp.allclose(out, ref, rtol=1e-5, atol=1e-5), (out, ref)

    # Secondary check: ragged row count (not a multiple of the tile) with a
    # forced small tile, exercising multi-tile accumulation + in-kernel tail
    # masking of padded garbage rows.
    key, k1, k2, k3 = jax.random.split(key, 4)
    n2 = 40
    x2 = jax.random.normal(k1, (1, n2, d), jnp.float32)
    y2 = jax.random.normal(k2, (1, n2, d), jnp.float32)
    m2 = jax.random.bernoulli(k3, 0.6, (1, n2, 1)).astype(jnp.float32)
    part = jax.block_until_ready(_masked_sq_partials(x2, y2, m2, tile_n=16))
    got = jnp.sum(part)
    want = jnp.sum(((x2 - y2) ** 2) * m2)
    assert jnp.allclose(got, want, rtol=1e-4, atol=1e-4), (got, want)

    print("KERNEL_OK")
</pallas_src>

<mosaic_0001>
module attributes {stable_mosaic.version = 11 : i64} {
  func.func @_masked_sqdiff_kernel(%arg0: i32, %arg1: i32, %arg2: memref<1x16x32xf32, #tpu.memory_space<vmem>>, %arg3: memref<1x16x32xf32, #tpu.memory_space<vmem>>, %arg4: memref<1x16x1xf32, #tpu.memory_space<vmem>>, %arg5: memref<1x16x32xf32, #tpu.memory_space<vmem>>) attributes {dimension_semantics = [#tpu.dimension_semantics<parallel>, #tpu.dimension_semantics<arbitrary>], iteration_bounds = array<i64: 3, 1>, scalar_prefetch = 0 : i64, scratch_operands = 0 : i64, tpu.core_type = #tpu.core_type<tc>, window_params = [{transform_indices = @transform_0, window_bounds = array<i64: 1, 16, 32>}, {transform_indices = @transform_1, window_bounds = array<i64: 1, 16, 32>}, {transform_indices = @transform_2, window_bounds = array<i64: 1, 16, 1>}, {transform_indices = @transform_3, window_bounds = array<i64: 1, 16, 32>}]} {
    %c0_i32 = arith.constant 0 : i32
    %0 = arith.cmpi eq, %arg1, %c0_i32 : i32
    %1 = arith.extui %0 : i1 to i32
    %c0_i32_0 = arith.constant 0 : i32
    %2 = arith.cmpi ne, %1, %c0_i32_0 : i32
    scf.if %2 {
      %cst_18 = arith.constant 0.000000e+00 : f32
      %31 = vector.broadcast %cst_18 : f32 to vector<1x16x32xf32>
      %c0_19 = arith.constant 0 : index
      %c0_20 = arith.constant 0 : index
      %c0_21 = arith.constant 0 : index
      %32 = vector.load %arg5[%c0_19, %c0_20, %c0_21] : memref<1x16x32xf32, #tpu.memory_space<vmem>>, vector<1x16x32xf32>
      tpu.vector_store %arg5[%c0_19, %c0_20, %c0_21], %31 {strides = array<i32>} : memref<1x16x32xf32, #tpu.memory_space<vmem>>, vector<1x16x32xf32>,
    } else {
    }
    %c16_i32 = arith.constant 16 : i32
    %3 = arith.muli %arg1, %c16_i32 : i32
    %4 = tpu.iota {dimensions = array<i32: 0>} : vector<16x1xi32>
    %5 = vector.broadcast %3 : i32 to vector<16x1xi32>
    %6 = arith.addi %5, %4 : vector<16x1xi32>
    %c16_i32_1 = arith.constant 16 : i32
    %7 = vector.broadcast %c16_i32_1 : i32 to vector<16x1xi32>
    %8 = arith.cmpi slt, %6, %7 : vector<16x1xi32>
    %c0 = arith.constant 0 : index
    %c0_2 = arith.constant 0 : index
    %c0_3 = arith.constant 0 : index
    %9 = vector.load %arg4[%c0, %c0_2, %c0_3] : memref<1x16x1xf32, #tpu.memory_space<vmem>>, vector<1x16x1xf32>
    %10 = vector.shape_cast %9 : vector<1x16x1xf32> to vector<16x1xf32>
    %cst = arith.constant 0.000000e+00 : f32
    %11 = vector.broadcast %cst : f32 to vector<16x1xf32>
    %12 = arith.select %8, %10, %11 : vector<16x1xi1>, vector<16x1xf32>
    %cst_4 = arith.constant 5.000000e-01 : f32
    %13 = vector.broadcast %cst_4 : f32 to vector<16x1xf32>
    %14 = arith.cmpf ogt, %12, %13 : vector<16x1xf32>
    %c0_5 = arith.constant 0 : index
    %c0_6 = arith.constant 0 : index
    %c0_7 = arith.constant 0 : index
    %15 = vector.load %arg2[%c0_5, %c0_6, %c0_7] : memref<1x16x32xf32, #tpu.memory_space<vmem>>, vector<1x16x32xf32>
    %16 = vector.shape_cast %15 : vector<1x16x32xf32> to vector<16x32xf32>
    %c0_8 = arith.constant 0 : index
    %c0_9 = arith.constant 0 : index
    %c0_10 = arith.constant 0 : index
    %17 = vector.load %arg3[%c0_8, %c0_9, %c0_10] : memref<1x16x32xf32, #tpu.memory_space<vmem>>, vector<1x16x32xf32>
    %18 = vector.shape_cast %17 : vector<1x16x32xf32> to vector<16x32xf32>
    %19 = arith.subf %16, %18 : vector<16x32xf32>
    %cst_11 = arith.constant 0.000000e+00 : f32
    %20 = vector.shape_cast %14 : vector<16x1xi1> to vector<16x1xi1>
    %21 = vector.broadcast %20 : vector<16x1xi1> to vector<16x32xi1>
    %22 = vector.broadcast %cst_11 : f32 to vector<16x32xf32>
    %23 = arith.select %21, %19, %22 : vector<16x32xi1>, vector<16x32xf32>
    %c0_12 = arith.constant 0 : index
    %c0_13 = arith.constant 0 : index
    %c0_14 = arith.constant 0 : index
    %24 = vector.load %arg5[%c0_12, %c0_13, %c0_14] : memref<1x16x32xf32, #tpu.memory_space<vmem>>, vector<1x16x32xf32>
    %25 = vector.shape_cast %24 : vector<1x16x32xf32> to vector<16x32xf32>
    %26 = arith.mulf %23, %23 : vector<16x32xf32>
    %27 = arith.addf %25, %26 : vector<16x32xf32>
    %c0_15 = arith.constant 0 : index
    %c0_16 = arith.constant 0 : index
    %c0_17 = arith.constant 0 : index
    %28 = vector.load %arg5[%c0_15, %c0_16, %c0_17] : memref<1x16x32xf32, #tpu.memory_space<vmem>>, vector<1x16x32xf32>
    %29 = vector.shape_cast %28 : vector<1x16x32xf32> to vector<16x32xf32>
    %30 = vector.shape_cast %27 : vector<16x32xf32> to vector<1x16x32xf32>
    tpu.vector_store %arg5[%c0_15, %c0_16, %c0_17], %30 {strides = array<i32>} : memref<1x16x32xf32, #tpu.memory_space<vmem>>, vector<1x16x32xf32>,
    return
  }
  func.func @transform_0(%arg0: i32, %arg1: i32) -> (i32, i32, i32) {
    %c0_i32 = arith.constant 0 : i32
    %c0_i32_0 = arith.constant 0 : i32
    return %arg0, %arg1, %c0_i32 : i32, i32, i32
  }
  func.func @transform_1(%arg0: i32, %arg1: i32) -> (i32, i32, i32) {
    %c0_i32 = arith.constant 0 : i32
    %c0_i32_0 = arith.constant 0 : i32
    return %arg0, %arg1, %c0_i32 : i32, i32, i32
  }
  func.func @transform_2(%arg0: i32, %arg1: i32) -> (i32, i32, i32) {
    %c0_i32 = arith.constant 0 : i32
    %c0_i32_0 = arith.constant 0 : i32
    return %arg0, %arg1, %c0_i32 : i32, i32, i32
  }
  func.func @transform_3(%arg0: i32, %arg1: i32) -> (i32, i32, i32) {
    %c0_i32 = arith.constant 0 : i32
    %c0_i32_0 = arith.constant 0 : i32
    %c0_i32_1 = arith.constant 0 : i32
    return %arg0, %c0_i32, %c0_i32_0 : i32, i32, i32
  }
}

</mosaic_0001>

<llo_original>
// kernel: _group_loss.1
$region0: #{_group_loss.1}
  #allocation0 [shape = 'u32[]', space=smem, size = 0x4, offset = 0x4, fixed_abs, tag = 'smem constant byte address 0x4 - core index']
  #allocation1 [shape = 'u32[144,128]{1,0:T(1,128)}', space=vmem, size = 0x12000, scoped, tag = 'internal scratch']
  %s0 = inlined_call_operand.vmem [shape: f32[3,16,32], index: 0, kind: input, shape index: {}]
  %s1 = inlined_call_operand.hbm [shape: f32[3,16,32], index: 1, kind: input, shape index: {}]
  %s2 = inlined_call_operand.vmem [shape: f32[3,16,1], index: 2, kind: input, shape index: {}]
  %s3 = inlined_call_operand.vmem [shape: f32[3,16,32], index: 3, kind: output, shape index: {}]
  %s4 = sld [smem:[#allocation0]]
  $region53: #{_group_loss.1} parent=0
    _
  %s6 = ssub.s32 1, %s4
  %s7 = scalar_select 0, %s6, %s4
  $region1: #{_group_loss.1} parent=0
    #allocation2 [shape = 'u8[16384]{0}', space=vmem, size = 0x4000, scoped, tag = 'input window, operand 1']
    #allocation3 [shape = 's32[2]{0}', space=sflag, size = 0x8, scoped, tag = 'scoped memory for _group_loss.1']
    %8 = vsyncpa [#allocation3], 0
    %s9 = scalar_lea.sflag [#allocation3], 1
    %10 = vsyncpa %s9, 0
    loop: start=0, step=1, limit=5
    $region2: #{_group_loss.1} parent=1 // loop_pre_header
      _
    $region3: #{_group_loss.1} parent=1 // loop_header
      %s12 = sphi 0, %s16
      %p13 = scmp.ge.s32.totalorder %s12, 5
      %s19 = sphi 0, %s31
      %s20 = sphi 0, %s27
      %s21 = sphi 0, %s19
      %s22 = sphi 0, %s20
      %s23 = sphi 0, %s21
      %s24 = sphi 0, %s22
      %s36 = sphi 0, %s38
      %s39 = sphi 0, %s36
      %s40 = sphi 0, %s39
      %s56 = sphi 0, %s40
      %s64 = sphi 0, %s66
      %s67 = sphi 0, %s64
      %s68 = sphi 0, %s67
      %s84 = sphi 0, %s68
      %s92 = sphi 0, %s94
      %s95 = sphi 0, %s92
      %s96 = sphi 0, %s95
      %s112 = sphi 0, %s96
      %s118 = sphi 0, %s120
      %s121 = sphi 0, %s118
      %s122 = sphi 0, %s121
      %s138 = sphi 0, %s122
    $region4: #{_group_loss.1} parent=1 // loop_header_branch
      %15 = sbr.rel (%p13) target = $region8
    $region5: #{_group_loss.1} parent=1 // loop_body
      %s17 = ssub.s32 %s12, 1
      %s18 = ssub.s32 %s12, 2
      %s25 = sadd.s32 1, %s20
      %p26 = scmp.ge.s32.totalorder %s25, 1
      %s27 = scalar_select %p26, 0, %s25
      %s28 = sadd.s32 1, %s19
      %s29 = scalar_select %p26, %s28, %s19
      %p30 = scmp.ge.s32.totalorder %s29, 3
      %s31 = scalar_select %p30, 0, %s29
      %s32 = ssub.s32 %s19, %s31
      %s33 = ssub.s32 %s20, %s27
      %s34 = sor.u32 %s32, %s33
      %p35 = scmp.eq.s32.totalorder %s34, 0
      %s37 = sadd.s32 %s36, 1
      %s38 = scalar_select %p35, %s36, %s37
      %p41 = pneg %p35
      %p42 = scmp.eq.s32.totalorder %s12, 2
      %p43 = por %p41, %p42
      %p44 = scmp.ne.s32.totalorder %s36, %s39
      %p45 = scmp.eq.s32.totalorder %s12, 0
      %p46 = por %p44, %p45
      %p47 = scmp.ne.s32.totalorder %s36, %s39
      %p48 = scmp.eq.s32.totalorder %s17, 2
      %p49 = por %p47, %p48
      %p50 = scmp.ne.s32.totalorder %s39, %s40
      %p51 = scmp.eq.s32.totalorder %s17, 0
      %p52 = por %p50, %p51
      %p53 = scmp.ne.s32.totalorder %s39, %s40
      %p54 = scmp.eq.s32.totalorder %s18, 2
      %p55 = por %p53, %p54
      %p57 = scmp.ne.s32.totalorder %s40, %s56
      %p58 = scmp.eq.s32.totalorder %s18, 0
      %p59 = por %p57, %p58
      %s60 = ssub.s32 %s19, %s31
      %s61 = ssub.s32 %s20, %s27
      %s62 = sor.u32 %s60, %s61
      %p63 = scmp.eq.s32.totalorder %s62, 0
      %s65 = sadd.s32 %s64, 1
      %s66 = scalar_select %p63, %s64, %s65
      %p69 = pneg %p63
      %p70 = scmp.eq.s32.totalorder %s12, 2
      %p71 = por %p69, %p70
      %p72 = scmp.ne.s32.totalorder %s64, %s67
      %p73 = scmp.eq.s32.totalorder %s12, 0
      %p74 = por %p72, %p73
      %p75 = scmp.ne.s32.totalorder %s64, %s67
      %p76 = scmp.eq.s32.totalorder %s17, 2
      %p77 = por %p75, %p76
      %p78 = scmp.ne.s32.totalorder %s67, %s68
      %p79 = scmp.eq.s32.totalorder %s17, 0
      %p80 = por %p78, %p79
      %p81 = scmp.ne.s32.totalorder %s67, %s68
      %p82 = scmp.eq.s32.totalorder %s18, 2
      %p83 = por %p81, %p82
      %p85 = scmp.ne.s32.totalorder %s68, %s84
      %p86 = scmp.eq.s32.totalorder %s18, 0
      %p87 = por %p85, %p86
      %s88 = ssub.s32 %s19, %s31
      %s89 = ssub.s32 %s20, %s27
      %s90 = sor.u32 %s88, %s89
      %p91 = scmp.eq.s32.totalorder %s90, 0
      %s93 = sadd.s32 %s92, 1
      %s94 = scalar_select %p91, %s92, %s93
      %p97 = pneg %p91
      %p98 = scmp.eq.s32.totalorder %s12, 2
      %p99 = por %p97, %p98
      %p100 = scmp.ne.s32.totalorder %s92, %s95
      %p101 = scmp.eq.s32.totalorder %s12, 0
      %p102 = por %p100, %p101
      %p103 = scmp.ne.s32.totalorder %s92, %s95
      %p104 = scmp.eq.s32.totalorder %s17, 2
      %p105 = por %p103, %p104
      %p106 = scmp.ne.s32.totalorder %s95, %s96
      %p107 = scmp.eq.s32.totalorder %s17, 0
      %p108 = por %p106, %p107
      %p109 = scmp.ne.s32.totalorder %s95, %s96
      %p110 = scmp.eq.s32.totalorder %s18, 2
      %p111 = por %p109, %p110
      %p113 = scmp.ne.s32.totalorder %s96, %s112
      %p114 = scmp.eq.s32.totalorder %s18, 0
      %p115 = por %p113, %p114
      %s116 = ssub.s32 %s19, %s31
      %p117 = scmp.eq.s32.totalorder %s116, 0
      %s119 = sadd.s32 %s118, 1
      %s120 = scalar_select %p117, %s118, %s119
      %p123 = pneg %p117
      %p124 = scmp.eq.s32.totalorder %s12, 2
      %p125 = por %p123, %p124
      %p126 = scmp.ne.s32.totalorder %s118, %s121
      %p127 = scmp.eq.s32.totalorder %s12, 0
      %p128 = por %p126, %p127
      %p129 = scmp.ne.s32.totalorder %s118, %s121
      %p130 = scmp.eq.s32.totalorder %s17, 2
      %p131 = por %p129, %p130
      %p132 = scmp.ne.s32.totalorder %s121, %s122
      %p133 = scmp.eq.s32.totalorder %s17, 0
      %p134 = por %p132, %p133
      %p135 = scmp.ne.s32.totalorder %s121, %s122
      %p136 = scmp.eq.s32.totalorder %s18, 2
      %p137 = por %p135, %p136
      %p139 = scmp.ne.s32.totalorder %s122, %s138
      %p140 = scmp.eq.s32.totalorder %s18, 0
      %p141 = por %p139, %p140
      %p142 = scmp.le.s32.totalorder 1, %s12
      %p143 = scmp.lt.s32.totalorder %s12, 4
      %p144 = pnand %p142, %p143
      %p145 = pneg %p144
      // Predicated region
      $region9: #{_group_loss.1} parent=5 // pred_check
        _
      $region10: #{_group_loss.1} parent=5 // pred_check_branch
        %147 = sbr.rel (%p144) target = $region12
      $region11: #{_group_loss.1} parent=5 // pred_region
        %s148 = ssub.s32 %s12, 1
      $region12: #{_group_loss.1} parent=5 // pred_fallthru
        _
      %p149 = scmp.lt.s32.totalorder %s12, 3
      // Predicated region
      $region13: #{_group_loss.1} parent=5 // pred_check
        %p150 = pneg %p149
      $region14: #{_group_loss.1} parent=5 // pred_check_branch
        %152 = sbr.rel (%p150) target = $region16
      $region15: #{_group_loss.1} parent=5 // pred_region
        // Predicated region
        $region17: #{_group_loss.1} parent=15 // pred_check
          %p153 = pneg %p46
        $region18: #{_group_loss.1} parent=15 // pred_check_branch
          %155 = sbr.rel (%p153) target = $region20
        $region19: #{_group_loss.1} parent=15 // pred_region
          %s156 = smul.u32 2, %s20
          %p157 = scmp.lt.s32.totalorder %s19, 2
          %s158 = scalar_select %p157, %s19, 2
          %p159 = scmp.lt.s32.totalorder %s156, 1
          %s160 = scalar_select %p159, %s156, 1
          %s161 = smul.addr %s158, 2
          %s162 = sadd.s32 %s160, %s161
          %s163 = smul.addr %s162, 8
          %s164 = scalar_lea.vmem %s0, %s163
          %s165 = smul.u32 2, %s20
        $region20: #{_group_loss.1} parent=15 // pred_fallthru
          _
        // Predicated region
        $region21: #{_group_loss.1} parent=15 // pred_check
          %p166 = pneg %p74
        $region22: #{_group_loss.1} parent=15 // pred_check_branch
          %168 = sbr.rel (%p166) target = $region24
        $region23: #{_group_loss.1} parent=15 // pred_region
          %s169 = sand.u32 %s64, 1
          %s170 = scalar_lea.sflag [#allocation3], %s169
          %s171 = sand.u32 %s64, 1
          %s172 = smul.addr %s171, 16
          %s173 = scalar_lea.vmem [#allocation2], %s172
          %s174 = smul.u32 2, %s20
          %s176 = ssub.s32 256, 256
          %177 = vsyncadd %s170, %s176
          %s178 = smul.addr %s19, 2
          %s179 = sadd.s32 %s174, %s178
          %s180 = smul.addr %s179, 128
          %s181 = scalar_lea.hbm %s1, %s180
          %s182 = sshll.u32 %s173, 4
          %s183 = int_to_ptr.vmem [resolvable:$true] %s182
          %188 = dma.hbm_to_vmem [thread:$0]  %s181, 256, %s183, %s170, 128, 128, 8
        $region24: #{_group_loss.1} parent=15 // pred_fallthru
          _
        // Predicated region
        $region25: #{_group_loss.1} parent=15 // pred_check
          %p189 = pneg %p102
        $region26: #{_group_loss.1} parent=15 // pred_check_branch
          %191 = sbr.rel (%p189) target = $region28
        $region27: #{_group_loss.1} parent=15 // pred_region
          %s192 = smul.u32 2, %s20
          %p193 = scmp.lt.s32.totalorder %s19, 2
          %s194 = scalar_select %p193, %s19, 2
          %p195 = scmp.lt.s32.totalorder %s192, 1
          %s196 = scalar_select %p195, %s192, 1
          %s197 = smul.addr %s194, 2
          %s198 = sadd.s32 %s196, %s197
          %s199 = smul.addr %s198, 8
          %s200 = scalar_lea.vmem %s2, %s199
          %s201 = smul.u32 2, %s20
        $region28: #{_group_loss.1} parent=15 // pred_fallthru
          _
      $region16: #{_group_loss.1} parent=5 // pred_fallthru
        _
      %p202 = scmp.le.s32.totalorder 1, %s12
      %p203 = scmp.lt.s32.totalorder %s12, 4
      %p204 = pnand %p202, %p203
      %p205 = pneg %p204
      // Predicated region
      $region29: #{_group_loss.1} parent=5 // pred_check
        _
      $region30: #{_group_loss.1} parent=5 // pred_check_branch
        %207 = sbr.rel (%p204) target = $region32
      $region31: #{_group_loss.1} parent=5 // pred_region
        %s208 = ssub.s32 %s12, 1
        %s209 = sand.u32 %s67, 1
        %s210 = scalar_lea.sflag [#allocation3], %s209
        %s211 = sand.u32 %s67, 1
        %s212 = smul.addr %s211, 16
        %s213 = scalar_lea.vmem [#allocation2], %s212
        // Predicated region
        $region33: #{_group_loss.1} parent=31 // pred_check
          %p214 = pneg %p80
        $region34: #{_group_loss.1} parent=31 // pred_check_branch
          %216 = sbr.rel (%p214) target = $region36
        $region35: #{_group_loss.1} parent=31 // pred_region
          %217 = dma.done %s210, 256
        $region36: #{_group_loss.1} parent=31 // pred_fallthru
          _
        %s218 = smul.u32 2, %s22
        %p219 = scmp.lt.s32.totalorder %s21, 2
        %s220 = scalar_select %p219, %s21, 2
        %p221 = scmp.lt.s32.totalorder %s218, 1
        %s222 = scalar_select %p221, %s218, 1
        %s223 = smul.addr %s220, 2
        %s224 = sadd.s32 %s222, %s223
        %s225 = smul.addr %s224, 8
        %s226 = scalar_lea.vmem %s0, %s225
        %p227 = pneg %p52
        %p228 = pneg %p49
        %s229 = sand.u32 %s67, 1
        %s230 = scalar_lea.sflag [#allocation3], %s229
        %s231 = sand.u32 %s67, 1
        %s232 = smul.addr %s231, 16
        %s233 = scalar_lea.vmem [#allocation2], %s232
        %p234 = pneg %p80
        %p235 = pneg %p77
        %s236 = smul.u32 2, %s22
        %p237 = scmp.lt.s32.totalorder %s21, 2
        %s238 = scalar_select %p237, %s21, 2
        %p239 = scmp.lt.s32.totalorder %s236, 1
        %s240 = scalar_select %p239, %s236, 1
        %s241 = smul.addr %s238, 2
        %s242 = sadd.s32 %s240, %s241
        %s243 = smul.addr %s242, 8
        %s244 = scalar_lea.vmem %s2, %s243
        %p245 = pneg %p108
        %p246 = pneg %p105
        %p247 = pneg %p134
        %p248 = pneg %p131
        %p249 = scmp.lt.s32.totalorder %s21, 2
        %s250 = scalar_select %p249, %s21, 2
        %s251 = smul.addr %s250, 2
        %s252 = smul.addr %s251, 8
        %s253 = scalar_lea.vmem %s3, %s252
        %s254 = smul.u32 2, %s22
        %p255 = scmp.lt.s32.totalorder %s21, 2
        %s256 = scalar_select %p255, %s21, 2
        %p257 = scmp.lt.s32.totalorder %s254, 1
        %s258 = scalar_select %p257, %s254, 1
        %s259 = smul.addr %s256, 2
        %s260 = sadd.s32 %s258, %s259
        %s261 = smul.addr %s260, 8
        %s262 = scalar_lea.vmem %s0, %s261
        %s263 = smul.u32 2, %s22
        %s264 = smul.u32 2, %s22
        %s265 = smul.u32 2, %s22
        %p266 = scmp.lt.s32.totalorder %s21, 2
        %s267 = scalar_select %p266, %s21, 2
        %p268 = scmp.lt.s32.totalorder %s265, 1
        %s269 = scalar_select %p268, %s265, 1
        %s270 = smul.addr %s267, 2
        %s271 = sadd.s32 %s269, %s270
        %s272 = smul.addr %s271, 8
        %s273 = scalar_lea.vmem %s2, %s272
        %s274 = smul.u32 2, %s22
        %p275 = scmp.lt.s32.totalorder %s21, 2
        %s276 = scalar_select %p275, %s21, 2
        %s277 = smul.addr %s276, 2
        %s278 = smul.addr %s277, 8
        %s279 = scalar_lea.vmem %s3, %s278
        %p280 = scmp.eq.s32.totalorder %s22, 0
        // Predicated region
        $region37: #{_group_loss.1} parent=31 // pred_check
          %p281 = pneg %p280
        $region38: #{_group_loss.1} parent=31 // pred_check_branch
          %283 = sbr.rel (%p281) target = $region40
        $region39: #{_group_loss.1} parent=31 // pred_region
          %vm284 = vcmask 261120
          %285 = vst.msk [vmem:[%s279] sm:$0xff] %vm284, 0.0
          %286 = vst.msk [vmem:[%s279 + $0x8] sm:$0xff] %vm284, 0.0
        $region40: #{_group_loss.1} parent=31 // pred_fallthru
          _
        %s287 = smul.u32 %s22, 16
        %v288 = vlaneseq
        %v289 = vshrl.u32 %v288, 7
        %v290 = vadd.s32 %v289, 8
        %v291 = vstv %s287
        %v292 = vadd.s32 %v291, %v289
        %v293 = vadd.s32 %v291, %v290
        %vm294 = vcmp.lt.s32.totalorder %v292, 16
        %vm295 = vcmp.lt.s32.totalorder %v293, 16
        %v296 = vld [vmem:[%s273] sm:$0xff]
        %v297 = vld [vmem:[%s273 + $0x8] sm:$0xff]
        %v298 = vsel %vm294, %v296, 0.0
        %v299 = vsel %vm295, %v297, 0.0
        %vm300 = vcmp.gt.f32.partialorder %v298, 0.5
        %vm301 = vcmp.gt.f32.partialorder %v299, 0.5
        %v302 = vld [vmem:[%s262] sm:$0xff]
        %v303 = vld [vmem:[%s262 + $0x8] sm:$0xff]
        %v304 = vld [vmem:[%s213] sm:$0xff]
        %v305 = vld [vmem:[%s213 + $0x8] sm:$0xff]
        %v306 = vsub.f32 %v302, %v304
        %v307 = vsub.f32 %v303, %v305
        %v308 = vsel %vm300, 1, 0
        %v309 = vsel %vm301, 1, 0
        %310 = vset.pattern.permute.xlu0 0
        %311 = vperm.xlu0 %310, %v308
        %v312 = vpop.permute.xlu0 %311
        %313 = vset.pattern.permute.xlu0 0
        %314 = vperm.xlu0 %313, %v309
        %v315 = vpop.permute.xlu0 %314
        %vm316 = vcmp.eq.s32.totalorder %v312, 1
        %vm317 = vcmp.eq.s32.totalorder %v315, 1
        %v318 = vsel %vm316, %v306, 0.0
        %v319 = vsel %vm317, %v307, 0.0
        %v320 = vld [vmem:[%s279] sm:$0xff]
        %v321 = vld [vmem:[%s279 + $0x8] sm:$0xff]
        %v322 = vmul.f32 %v318, %v318
        %v323 = vmul.f32 %v319, %v319
        %v324 = vadd.f32 %v320, %v322
        %v325 = vadd.f32 %v321, %v323
        %vm326 = vcmask 261120
        %327 = vst.msk [vmem:[%s279] sm:$0xff] %vm326, %v324
        %328 = vst.msk [vmem:[%s279 + $0x8] sm:$0xff] %vm326, %v325
        %p329 = scmp.lt.s32.totalorder %s21, 2
        %s330 = scalar_select %p329, %s21, 2
        %s331 = smul.addr %s330, 2
        %s332 = smul.addr %s331, 8
        %s333 = scalar_lea.vmem %s3, %s332
        // Predicated region
        $region41: #{_group_loss.1} parent=31 // pred_check
          %p334 = pneg %p131
        $region42: #{_group_loss.1} parent=31 // pred_check_branch
          %336 = sbr.rel (%p334) target = $region44
        $region43: #{_group_loss.1} parent=31 // pred_region
          _
        $region44: #{_group_loss.1} parent=31 // pred_fallthru
          _
      $region32: #{_group_loss.1} parent=5 // pred_fallthru
        _
      %p337 = scmp.le.s32.totalorder 2, %s12
      // Predicated region
      $region45: #{_group_loss.1} parent=5 // pred_check
        %p338 = pneg %p337
      $region46: #{_group_loss.1} parent=5 // pred_check_branch
        %340 = sbr.rel (%p338) target = $region48
      $region47: #{_group_loss.1} parent=5 // pred_region
        %s341 = ssub.s32 %s12, 2
        // Predicated region
        $region49: #{_group_loss.1} parent=47 // pred_check
          %p342 = pneg %p137
        $region50: #{_group_loss.1} parent=47 // pred_check_branch
          %344 = sbr.rel (%p342) target = $region52
        $region51: #{_group_loss.1} parent=47 // pred_region
          %p345 = scmp.lt.s32.totalorder %s23, 2
          %s346 = scalar_select %p345, %s23, 2
          %s347 = smul.addr %s346, 2
          %s348 = smul.addr %s347, 8
          %s349 = scalar_lea.vmem %s3, %s348
        $region52: #{_group_loss.1} parent=47 // pred_fallthru
          _
      $region48: #{_group_loss.1} parent=5 // pred_fallthru
        _
    $region6: #{_group_loss.1} parent=1 // loop_footer
      %s16 = sadd.s32 1, %s12
    $region7: #{_group_loss.1} parent=1 // loop_footer_branch
      %11 = sbr.rel target = $region3
    $region8: #{_group_loss.1} parent=1 // loop_exit
      _
    %350 = vsyncpa [#allocation3], 1
    %s351 = scalar_lea.sflag [#allocation3], 1
    %352 = vsyncpa %s351, 1

</llo_original>
